<compile_context>
chip_gen: v5e
topology: v5e:2x2
jax: 0.10.0
libtpu: 0.0.40
codegen_flags: <defaults>
</compile_context>

<pallas_src>
import functools

import jax
import jax.numpy as jnp
from jax.experimental import pallas as pl
from jax.experimental.pallas import tpu as pltpu

LANES = 128
_TARGET_STEP_BYTES = 4 << 20      # ~4 MiB of input data DMA'd per grid step
_MAX_UNROLL = 512                 # cap on 2*S*B*n_chunks unrolled inner iterations


def _round_up(x, m):
    return (x + m - 1) // m * m


def _choose_ts(bytes_per_lane, hw, inner_per_chunk):
    """Spatial (lane) block width: multiple of 128, sized for ~4 MiB per grid step."""
    ts = max(LANES, (_TARGET_STEP_BYTES // max(bytes_per_lane, 1)) // LANES * LANES)
    ts = min(ts, _round_up(hw, LANES))
    # Bound the fully-unrolled in-kernel chunk loop (compile-time safety).
    max_chunks = max(1, _MAX_UNROLL // max(inner_per_chunk, 1))
    ts = min(ts, max_chunks * LANES)
    return ts


def _fused_masked_sse_kernel(mask_ref, paf_t_ref, hm_t_ref, *rest,
                             n_losses, n_chunks, batch):
    """Per spatial block: for every loss (stage x {paf, heatmap}) compute the
    per-channel, lane-wise partial sums of (pred - tgt)^2 over positions where
    mask != 1 (masked positions contribute exactly zero, matching the PyTorch
    `target[mask == 1] = pred.detach()[mask == 1]` semantics).

    Blocks: mask (B, ts) f32, targets/preds (B, C, ts), outputs (1, C, 128) f32.
    Each grid step writes its own output block -> spatial axis is "parallel".
    """
    pred_refs = rest[:n_losses]
    out_refs = rest[n_losses:]
    tgt_refs = (paf_t_ref, hm_t_ref)      # loss order: paf_s0, hm_s0, paf_s1, ...

    for li in range(n_losses):
        pred_ref = pred_refs[li]
        tgt_ref = tgt_refs[li % 2]
        c = pred_ref.shape[1]
        acc = jnp.zeros((c, LANES), jnp.float32)   # register-resident accumulator
        # Stream 128-lane chunks straight from the refs: small live set, pure VPU.
        for b in range(batch):
            for k in range(n_chunks):
                lo = k * LANES
                keep = mask_ref[b:b + 1, lo:lo + LANES] != jnp.float32(1.0)   # (1,128)
                p = pred_ref[b, :, lo:lo + LANES].astype(jnp.float32)         # (c,128)
                t = tgt_ref[b, :, lo:lo + LANES].astype(jnp.float32)
                d = p - t
                acc = acc + jnp.where(keep, d * d, jnp.float32(0.0))
        out_refs[li][0] = acc


def _fused_partial_sums(preds, paf_t, hm_t, mask_pad, ts):
    """One pallas_call producing, for each loss, (num_spatial_blocks, C, 128) partials."""
    B, Cp, _ = paf_t.shape
    Ch = hm_t.shape[1]
    n_losses = len(preds)
    n_chunks = ts // LANES
    num_s = mask_pad.shape[1] // ts

    def data_spec(c):
        return pl.BlockSpec((B, c, ts), lambda s: (0, 0, s))

    def out_spec(c):
        return pl.BlockSpec((1, c, LANES), lambda s: (s, 0, 0))

    in_specs = [pl.BlockSpec((B, ts), lambda s: (0, s)),   # mask, reused by all losses
                data_spec(Cp), data_spec(Ch)]
    in_specs += [data_spec(p.shape[1]) for p in preds]

    out_shapes = tuple(jax.ShapeDtypeStruct((num_s, p.shape[1], LANES), jnp.float32)
                       for p in preds)
    out_specs = tuple(out_spec(p.shape[1]) for p in preds)

    kern = functools.partial(_fused_masked_sse_kernel,
                             n_losses=n_losses, n_chunks=n_chunks, batch=B)

    return pl.pallas_call(
        kern,
        out_shape=out_shapes,
        grid_spec=pltpu.PrefetchScalarGridSpec(
            num_scalar_prefetch=0,
            grid=(num_s,),
            in_specs=in_specs,
            out_specs=out_specs,
        ),
        compiler_params=pltpu.CompilerParams(
            dimension_semantics=("parallel",),
            vmem_limit_bytes=48 * 1024 * 1024,
        ),
    )(mask_pad, paf_t, hm_t, *preds)


def _fused_stage_losses_impl(pafs_ys, heatmaps_ys, pafs_t, heatmaps_t, ignore_mask):
    B, Cp, H, W = pafs_t.shape
    Ch = heatmaps_t.shape[1]
    HW = H * W
    S = len(pafs_ys)

    paf_t = pafs_t.reshape(B, Cp, HW)       # free reshape (merge trailing dims)
    hm_t = heatmaps_t.reshape(B, Ch, HW)

    preds = []
    for py, hy in zip(pafs_ys, heatmaps_ys):
        # TODO(synk): F.interpolate bilinear-resize branch (stages whose spatial size
        # differs from the targets) is not implemented; stages must match targets.
        assert py.shape == pafs_t.shape
        assert hy.shape == heatmaps_t.shape
        preds.append(py.reshape(B, Cp, HW))
        preds.append(hy.reshape(B, Ch, HW))

    itemsize = max(jnp.dtype(paf_t.dtype).itemsize, jnp.dtype(preds[0].dtype).itemsize)
    bytes_per_lane = B * (S + 1) * (Cp + Ch) * itemsize
    ts = _choose_ts(bytes_per_lane, HW, inner_per_chunk=2 * S * B)
    num_s = pl.cdiv(HW, ts)
    hw_pad = num_s * ts

    # Tiny (B, HW) mask; pad with 1.0 ("ignore") so any OOB lanes read by the last
    # spatial block of the big tensors are excluded without in-kernel iota masks.
    mask = ignore_mask.reshape(B, HW).astype(jnp.float32)
    if hw_pad != HW:
        mask = jnp.pad(mask, ((0, 0), (0, hw_pad - HW)), constant_values=1.0)

    partials = _fused_partial_sums(preds, paf_t, hm_t, mask, ts)

    n_paf = jnp.float32(pafs_t.size)
    n_hm = jnp.float32(heatmaps_t.size)
    paf_losses = tuple(jnp.sum(partials[2 * s]) / n_paf for s in range(S))
    hm_losses = tuple(jnp.sum(partials[2 * s + 1]) / n_hm for s in range(S))
    return paf_losses, hm_losses


@jax.custom_vjp
def _fused_stage_losses(pafs_ys, heatmaps_ys, pafs_t, heatmaps_t, ignore_mask):
    return _fused_stage_losses_impl(pafs_ys, heatmaps_ys, pafs_t, heatmaps_t, ignore_mask)


def _fused_stage_losses_fwd(pafs_ys, heatmaps_ys, pafs_t, heatmaps_t, ignore_mask):
    out = _fused_stage_losses_impl(pafs_ys, heatmaps_ys, pafs_t, heatmaps_t, ignore_mask)
    return out, (pafs_ys, heatmaps_ys, pafs_t, heatmaps_t, ignore_mask)


def _fused_stage_losses_bwd(res, g):
    # Pure-JAX backward; matches the .detach() semantics: masked positions carry
    # zero gradient, grad_pred = g * 2*(pred - tgt)*keep / n.
    pafs_ys, heatmaps_ys, pafs_t, heatmaps_t, ignore_mask = res
    g_paf, g_hm = g
    B, _, H, W = pafs_t.shape
    keep = ignore_mask.reshape(B, 1, H, W).astype(jnp.float32) != 1.0
    pt = pafs_t.astype(jnp.float32)
    ht = heatmaps_t.astype(jnp.float32)
    inv_np = 2.0 / pafs_t.size
    inv_nh = 2.0 / heatmaps_t.size

    d_paf_ys, d_hm_ys = [], []
    d_paf_t = jnp.zeros_like(pt)
    d_hm_t = jnp.zeros_like(ht)
    for gp, gh, py, hy in zip(g_paf, g_hm, pafs_ys, heatmaps_ys):
        gp_full = (gp * inv_np) * jnp.where(keep, py.astype(jnp.float32) - pt, 0.0)
        gh_full = (gh * inv_nh) * jnp.where(keep, hy.astype(jnp.float32) - ht, 0.0)
        d_paf_ys.append(gp_full.astype(py.dtype))
        d_hm_ys.append(gh_full.astype(hy.dtype))
        d_paf_t = d_paf_t - gp_full
        d_hm_t = d_hm_t - gh_full

    return (tuple(d_paf_ys), tuple(d_hm_ys),
            d_paf_t.astype(pafs_t.dtype), d_hm_t.astype(heatmaps_t.dtype),
            jnp.zeros_like(ignore_mask))


_fused_stage_losses.defvjp(_fused_stage_losses_fwd, _fused_stage_losses_bwd)


def compute_loss(pafs_ys, heatmaps_ys, pafs_t, heatmaps_t, ignore_mask):
    """JAX/Pallas port of the reference compute_loss (forward semantics preserved)."""
    paf_losses, hm_losses = _fused_stage_losses(
        tuple(pafs_ys), tuple(heatmaps_ys), pafs_t, heatmaps_t, ignore_mask)
    total_loss = jnp.float32(0.0)
    for p_l, h_l in zip(paf_losses, hm_losses):
        total_loss = total_loss + p_l + h_l
    return total_loss, list(paf_losses), list(hm_losses)


compute_loss_jit = jax.jit(compute_loss)


def _reference_masked_mse(pred, tgt, mask):
    """Pure-JAX reference for correctness checking."""
    pred = pred.astype(jnp.float32)
    tgt = tgt.astype(jnp.float32)
    tgt = jnp.where(mask == 1.0, pred, tgt)
    return jnp.sum((pred - tgt) ** 2) / pred.size


if __name__ == "__main__":
    key = jax.random.PRNGKey(0)
    B, Cp, Ch, H, W = 2, 4, 3, 16, 16
    n_stages = 2

    keys = jax.random.split(key, 3 + 2 * n_stages)
    pafs_t = jax.random.normal(keys[0], (B, Cp, H, W), dtype=jnp.float32)
    heatmaps_t = jax.random.normal(keys[1], (B, Ch, H, W), dtype=jnp.float32)
    ignore_mask = (jax.random.uniform(keys[2], (B, H, W)) > 0.7).astype(jnp.float32)

    pafs_ys = [jax.random.normal(keys[3 + 2 * s], (B, Cp, H, W), dtype=jnp.float32)
               for s in range(n_stages)]
    heatmaps_ys = [jax.random.normal(keys[4 + 2 * s], (B, Ch, H, W), dtype=jnp.float32)
                   for s in range(n_stages)]

    total_loss, paf_log, hm_log = compute_loss_jit(
        pafs_ys, heatmaps_ys, pafs_t, heatmaps_t, ignore_mask)
    jax.block_until_ready(total_loss)

    # silent numerical sanity check against a pure-JAX reference
    paf_masks = jnp.broadcast_to(ignore_mask[:, None, :, :], (B, Cp, H, W))
    hm_masks = jnp.broadcast_to(ignore_mask[:, None, :, :], (B, Ch, H, W))
    ref_total = jnp.float32(0.0)
    for s in range(n_stages):
        ref_total = (ref_total
                     + _reference_masked_mse(pafs_ys[s], pafs_t, paf_masks)
                     + _reference_masked_mse(heatmaps_ys[s], heatmaps_t, hm_masks))
    assert jnp.allclose(total_loss, ref_total, rtol=1e-5, atol=1e-6), (
        total_loss, ref_total)

    print("KERNEL_OK")
</pallas_src>

<mosaic_0001>
module attributes {stable_mosaic.version = 11 : i64} {
  func.func @_fused_masked_sse_kernel(%arg0: i32, %arg1: memref<2x256xf32, #tpu.memory_space<vmem>>, %arg2: memref<2x4x256xf32, #tpu.memory_space<vmem>>, %arg3: memref<2x3x256xf32, #tpu.memory_space<vmem>>, %arg4: memref<2x4x256xf32, #tpu.memory_space<vmem>>, %arg5: memref<2x3x256xf32, #tpu.memory_space<vmem>>, %arg6: memref<2x4x256xf32, #tpu.memory_space<vmem>>, %arg7: memref<2x3x256xf32, #tpu.memory_space<vmem>>, %arg8: memref<1x4x128xf32, #tpu.memory_space<vmem>>, %arg9: memref<1x3x128xf32, #tpu.memory_space<vmem>>, %arg10: memref<1x4x128xf32, #tpu.memory_space<vmem>>, %arg11: memref<1x3x128xf32, #tpu.memory_space<vmem>>) attributes {dimension_semantics = [#tpu.dimension_semantics<parallel>], iteration_bounds = array<i64: 1>, scalar_prefetch = 0 : i64, scratch_operands = 0 : i64, tpu.core_type = #tpu.core_type<tc>, window_params = [{transform_indices = @transform_0, window_bounds = array<i64: 2, 256>}, {transform_indices = @transform_1, window_bounds = array<i64: 2, 4, 256>}, {transform_indices = @transform_2, window_bounds = array<i64: 2, 3, 256>}, {transform_indices = @transform_3, window_bounds = array<i64: 2, 4, 256>}, {transform_indices = @transform_4, window_bounds = array<i64: 2, 3, 256>}, {transform_indices = @transform_5, window_bounds = array<i64: 2, 4, 256>}, {transform_indices = @transform_6, window_bounds = array<i64: 2, 3, 256>}, {transform_indices = @transform_7, window_bounds = array<i64: 1, 4, 128>}, {transform_indices = @transform_8, window_bounds = array<i64: 1, 3, 128>}, {transform_indices = @transform_9, window_bounds = array<i64: 1, 4, 128>}, {transform_indices = @transform_10, window_bounds = array<i64: 1, 3, 128>}]} {
    %cst = arith.constant 0.000000e+00 : f32
    %0 = vector.broadcast %cst : f32 to vector<4x128xf32>
    %c0 = arith.constant 0 : index
    %c0_0 = arith.constant 0 : index
    %1 = vector.load %arg1[%c0, %c0_0] : memref<2x256xf32, #tpu.memory_space<vmem>>, vector<1x128xf32>
    %cst_1 = arith.constant 1.000000e+00 : f32
    %2 = vector.broadcast %cst_1 : f32 to vector<1x128xf32>
    %3 = arith.cmpf one, %1, %2 : vector<1x128xf32>
    %c0_2 = arith.constant 0 : index
    %c0_3 = arith.constant 0 : index
    %c0_4 = arith.constant 0 : index
    %4 = vector.load %arg4[%c0_2, %c0_3, %c0_4] : memref<2x4x256xf32, #tpu.memory_space<vmem>>, vector<1x4x128xf32>
    %5 = vector.shape_cast %4 : vector<1x4x128xf32> to vector<4x128xf32>
    %c0_5 = arith.constant 0 : index
    %c0_6 = arith.constant 0 : index
    %c0_7 = arith.constant 0 : index
    %6 = vector.load %arg2[%c0_5, %c0_6, %c0_7] : memref<2x4x256xf32, #tpu.memory_space<vmem>>, vector<1x4x128xf32>
    %7 = vector.shape_cast %6 : vector<1x4x128xf32> to vector<4x128xf32>
    %8 = arith.subf %5, %7 : vector<4x128xf32>
    %9 = arith.mulf %8, %8 : vector<4x128xf32>
    %cst_8 = arith.constant 0.000000e+00 : f32
    %10 = vector.shape_cast %3 : vector<1x128xi1> to vector<1x128xi1>
    %11 = vector.broadcast %10 : vector<1x128xi1> to vector<4x128xi1>
    %12 = vector.broadcast %cst_8 : f32 to vector<4x128xf32>
    %13 = arith.select %11, %9, %12 : vector<4x128xi1>, vector<4x128xf32>
    %14 = arith.addf %0, %13 : vector<4x128xf32>
    %c0_9 = arith.constant 0 : index
    %c128 = arith.constant 128 : index
    %15 = vector.load %arg1[%c0_9, %c128] : memref<2x256xf32, #tpu.memory_space<vmem>>, vector<1x128xf32>
    %cst_10 = arith.constant 1.000000e+00 : f32
    %16 = vector.broadcast %cst_10 : f32 to vector<1x128xf32>
    %17 = arith.cmpf one, %15, %16 : vector<1x128xf32>
    %c0_11 = arith.constant 0 : index
    %c0_12 = arith.constant 0 : index
    %c128_13 = arith.constant 128 : index
    %18 = vector.load %arg4[%c0_11, %c0_12, %c128_13] : memref<2x4x256xf32, #tpu.memory_space<vmem>>, vector<1x4x128xf32>
    %19 = vector.shape_cast %18 : vector<1x4x128xf32> to vector<4x128xf32>
    %c0_14 = arith.constant 0 : index
    %c0_15 = arith.constant 0 : index
    %c128_16 = arith.constant 128 : index
    %20 = vector.load %arg2[%c0_14, %c0_15, %c128_16] : memref<2x4x256xf32, #tpu.memory_space<vmem>>, vector<1x4x128xf32>
    %21 = vector.shape_cast %20 : vector<1x4x128xf32> to vector<4x128xf32>
    %22 = arith.subf %19, %21 : vector<4x128xf32>
    %23 = arith.mulf %22, %22 : vector<4x128xf32>
    %cst_17 = arith.constant 0.000000e+00 : f32
    %24 = vector.shape_cast %17 : vector<1x128xi1> to vector<1x128xi1>
    %25 = vector.broadcast %24 : vector<1x128xi1> to vector<4x128xi1>
    %26 = vector.broadcast %cst_17 : f32 to vector<4x128xf32>
    %27 = arith.select %25, %23, %26 : vector<4x128xi1>, vector<4x128xf32>
    %28 = arith.addf %14, %27 : vector<4x128xf32>
    %c1 = arith.constant 1 : index
    %c0_18 = arith.constant 0 : index
    %29 = vector.load %arg1[%c1, %c0_18] : memref<2x256xf32, #tpu.memory_space<vmem>>, vector<1x128xf32>
    %cst_19 = arith.constant 1.000000e+00 : f32
    %30 = vector.broadcast %cst_19 : f32 to vector<1x128xf32>
    %31 = arith.cmpf one, %29, %30 : vector<1x128xf32>
    %c1_20 = arith.constant 1 : index
    %c0_21 = arith.constant 0 : index
    %c0_22 = arith.constant 0 : index
    %32 = vector.load %arg4[%c1_20, %c0_21, %c0_22] : memref<2x4x256xf32, #tpu.memory_space<vmem>>, vector<1x4x128xf32>
    %33 = vector.shape_cast %32 : vector<1x4x128xf32> to vector<4x128xf32>
    %c1_23 = arith.constant 1 : index
    %c0_24 = arith.constant 0 : index
    %c0_25 = arith.constant 0 : index
    %34 = vector.load %arg2[%c1_23, %c0_24, %c0_25] : memref<2x4x256xf32, #tpu.memory_space<vmem>>, vector<1x4x128xf32>
    %35 = vector.shape_cast %34 : vector<1x4x128xf32> to vector<4x128xf32>
    %36 = arith.subf %33, %35 : vector<4x128xf32>
    %37 = arith.mulf %36, %36 : vector<4x128xf32>
    %cst_26 = arith.constant 0.000000e+00 : f32
    %38 = vector.shape_cast %31 : vector<1x128xi1> to vector<1x128xi1>
    %39 = vector.broadcast %38 : vector<1x128xi1> to vector<4x128xi1>
    %40 = vector.broadcast %cst_26 : f32 to vector<4x128xf32>
    %41 = arith.select %39, %37, %40 : vector<4x128xi1>, vector<4x128xf32>
    %42 = arith.addf %28, %41 : vector<4x128xf32>
    %c1_27 = arith.constant 1 : index
    %c128_28 = arith.constant 128 : index
    %43 = vector.load %arg1[%c1_27, %c128_28] : memref<2x256xf32, #tpu.memory_space<vmem>>, vector<1x128xf32>
    %cst_29 = arith.constant 1.000000e+00 : f32
    %44 = vector.broadcast %cst_29 : f32 to vector<1x128xf32>
    %45 = arith.cmpf one, %43, %44 : vector<1x128xf32>
    %c1_30 = arith.constant 1 : index
    %c0_31 = arith.constant 0 : index
    %c128_32 = arith.constant 128 : index
    %46 = vector.load %arg4[%c1_30, %c0_31, %c128_32] : memref<2x4x256xf32, #tpu.memory_space<vmem>>, vector<1x4x128xf32>
    %47 = vector.shape_cast %46 : vector<1x4x128xf32> to vector<4x128xf32>
    %c1_33 = arith.constant 1 : index
    %c0_34 = arith.constant 0 : index
    %c128_35 = arith.constant 128 : index
    %48 = vector.load %arg2[%c1_33, %c0_34, %c128_35] : memref<2x4x256xf32, #tpu.memory_space<vmem>>, vector<1x4x128xf32>
    %49 = vector.shape_cast %48 : vector<1x4x128xf32> to vector<4x128xf32>
    %50 = arith.subf %47, %49 : vector<4x128xf32>
    %51 = arith.mulf %50, %50 : vector<4x128xf32>
    %cst_36 = arith.constant 0.000000e+00 : f32
    %52 = vector.shape_cast %45 : vector<1x128xi1> to vector<1x128xi1>
    %53 = vector.broadcast %52 : vector<1x128xi1> to vector<4x128xi1>
    %54 = vector.broadcast %cst_36 : f32 to vector<4x128xf32>
    %55 = arith.select %53, %51, %54 : vector<4x128xi1>, vector<4x128xf32>
    %56 = arith.addf %42, %55 : vector<4x128xf32>
    %c0_37 = arith.constant 0 : index
    %c0_38 = arith.constant 0 : index
    %c0_39 = arith.constant 0 : index
    %57 = vector.load %arg8[%c0_37, %c0_38, %c0_39] : memref<1x4x128xf32, #tpu.memory_space<vmem>>, vector<1x4x128xf32>
    %58 = vector.shape_cast %57 : vector<1x4x128xf32> to vector<4x128xf32>
    %59 = vector.shape_cast %56 : vector<4x128xf32> to vector<1x4x128xf32>
    tpu.vector_store %arg8[%c0_37, %c0_38, %c0_39], %59 {strides = array<i32>} : memref<1x4x128xf32, #tpu.memory_space<vmem>>, vector<1x4x128xf32>,
    %cst_40 = arith.constant 0.000000e+00 : f32
    %60 = vector.broadcast %cst_40 : f32 to vector<3x128xf32>
    %c0_41 = arith.constant 0 : index
    %c0_42 = arith.constant 0 : index
    %61 = vector.load %arg1[%c0_41, %c0_42] : memref<2x256xf32, #tpu.memory_space<vmem>>, vector<1x128xf32>
    %cst_43 = arith.constant 1.000000e+00 : f32
    %62 = vector.broadcast %cst_43 : f32 to vector<1x128xf32>
    %63 = arith.cmpf one, %61, %62 : vector<1x128xf32>
    %c0_44 = arith.constant 0 : index
    %c0_45 = arith.constant 0 : index
    %c0_46 = arith.constant 0 : index
    %64 = vector.load %arg5[%c0_44, %c0_45, %c0_46] : memref<2x3x256xf32, #tpu.memory_space<vmem>>, vector<1x3x128xf32>
    %65 = vector.shape_cast %64 : vector<1x3x128xf32> to vector<3x128xf32>
    %c0_47 = arith.constant 0 : index
    %c0_48 = arith.constant 0 : index
    %c0_49 = arith.constant 0 : index
    %66 = vector.load %arg3[%c0_47, %c0_48, %c0_49] : memref<2x3x256xf32, #tpu.memory_space<vmem>>, vector<1x3x128xf32>
    %67 = vector.shape_cast %66 : vector<1x3x128xf32> to vector<3x128xf32>
    %68 = arith.subf %65, %67 : vector<3x128xf32>
    %69 = arith.mulf %68, %68 : vector<3x128xf32>
    %cst_50 = arith.constant 0.000000e+00 : f32
    %70 = vector.shape_cast %63 : vector<1x128xi1> to vector<1x128xi1>
    %71 = vector.broadcast %70 : vector<1x128xi1> to vector<3x128xi1>
    %72 = vector.broadcast %cst_50 : f32 to vector<3x128xf32>
    %73 = arith.select %71, %69, %72 : vector<3x128xi1>, vector<3x128xf32>
    %74 = arith.addf %60, %73 : vector<3x128xf32>
    %c0_51 = arith.constant 0 : index
    %c128_52 = arith.constant 128 : index
    %75 = vector.load %arg1[%c0_51, %c128_52] : memref<2x256xf32, #tpu.memory_space<vmem>>, vector<1x128xf32>
    %cst_53 = arith.constant 1.000000e+00 : f32
    %76 = vector.broadcast %cst_53 : f32 to vector<1x128xf32>
    %77 = arith.cmpf one, %75, %76 : vector<1x128xf32>
    %c0_54 = arith.constant 0 : index
    %c0_55 = arith.constant 0 : index
    %c128_56 = arith.constant 128 : index
    %78 = vector.load %arg5[%c0_54, %c0_55, %c128_56] : memref<2x3x256xf32, #tpu.memory_space<vmem>>, vector<1x3x128xf32>
    %79 = vector.shape_cast %78 : vector<1x3x128xf32> to vector<3x128xf32>
    %c0_57 = arith.constant 0 : index
    %c0_58 = arith.constant 0 : index
    %c128_59 = arith.constant 128 : index
    %80 = vector.load %arg3[%c0_57, %c0_58, %c128_59] : memref<2x3x256xf32, #tpu.memory_space<vmem>>, vector<1x3x128xf32>
    %81 = vector.shape_cast %80 : vector<1x3x128xf32> to vector<3x128xf32>
    %82 = arith.subf %79, %81 : vector<3x128xf32>
    %83 = arith.mulf %82, %82 : vector<3x128xf32>
    %cst_60 = arith.constant 0.000000e+00 : f32
    %84 = vector.shape_cast %77 : vector<1x128xi1> to vector<1x128xi1>
    %85 = vector.broadcast %84 : vector<1x128xi1> to vector<3x128xi1>
    %86 = vector.broadcast %cst_60 : f32 to vector<3x128xf32>
    %87 = arith.select %85, %83, %86 : vector<3x128xi1>, vector<3x128xf32>
    %88 = arith.addf %74, %87 : vector<3x128xf32>
    %c1_61 = arith.constant 1 : index
    %c0_62 = arith.constant 0 : index
    %89 = vector.load %arg1[%c1_61, %c0_62] : memref<2x256xf32, #tpu.memory_space<vmem>>, vector<1x128xf32>
    %cst_63 = arith.constant 1.000000e+00 : f32
    %90 = vector.broadcast %cst_63 : f32 to vector<1x128xf32>
    %91 = arith.cmpf one, %89, %90 : vector<1x128xf32>
    %c1_64 = arith.constant 1 : index
    %c0_65 = arith.constant 0 : index
    %c0_66 = arith.constant 0 : index
    %92 = vector.load %arg5[%c1_64, %c0_65, %c0_66] : memref<2x3x256xf32, #tpu.memory_space<vmem>>, vector<1x3x128xf32>
    %93 = vector.shape_cast %92 : vector<1x3x128xf32> to vector<3x128xf32>
    %c1_67 = arith.constant 1 : index
    %c0_68 = arith.constant 0 : index
    %c0_69 = arith.constant 0 : index
    %94 = vector.load %arg3[%c1_67, %c0_68, %c0_69] : memref<2x3x256xf32, #tpu.memory_space<vmem>>, vector<1x3x128xf32>
    %95 = vector.shape_cast %94 : vector<1x3x128xf32> to vector<3x128xf32>
    %96 = arith.subf %93, %95 : vector<3x128xf32>
    %97 = arith.mulf %96, %96 : vector<3x128xf32>
    %cst_70 = arith.constant 0.000000e+00 : f32
    %98 = vector.shape_cast %91 : vector<1x128xi1> to vector<1x128xi1>
    %99 = vector.broadcast %98 : vector<1x128xi1> to vector<3x128xi1>
    %100 = vector.broadcast %cst_70 : f32 to vector<3x128xf32>
    %101 = arith.select %99, %97, %100 : vector<3x128xi1>, vector<3x128xf32>
    %102 = arith.addf %88, %101 : vector<3x128xf32>
    %c1_71 = arith.constant 1 : index
    %c128_72 = arith.constant 128 : index
    %103 = vector.load %arg1[%c1_71, %c128_72] : memref<2x256xf32, #tpu.memory_space<vmem>>, vector<1x128xf32>
    %cst_73 = arith.constant 1.000000e+00 : f32
    %104 = vector.broadcast %cst_73 : f32 to vector<1x128xf32>
    %105 = arith.cmpf one, %103, %104 : vector<1x128xf32>
    %c1_74 = arith.constant 1 : index
    %c0_75 = arith.constant 0 : index
    %c128_76 = arith.constant 128 : index
    %106 = vector.load %arg5[%c1_74, %c0_75, %c128_76] : memref<2x3x256xf32, #tpu.memory_space<vmem>>, vector<1x3x128xf32>
    %107 = vector.shape_cast %106 : vector<1x3x128xf32> to vector<3x128xf32>
    %c1_77 = arith.constant 1 : index
    %c0_78 = arith.constant 0 : index
    %c128_79 = arith.constant 128 : index
    %108 = vector.load %arg3[%c1_77, %c0_78, %c128_79] : memref<2x3x256xf32, #tpu.memory_space<vmem>>, vector<1x3x128xf32>
    %109 = vector.shape_cast %108 : vector<1x3x128xf32> to vector<3x128xf32>
    %110 = arith.subf %107, %109 : vector<3x128xf32>
    %111 = arith.mulf %110, %110 : vector<3x128xf32>
    %cst_80 = arith.constant 0.000000e+00 : f32
    %112 = vector.shape_cast %105 : vector<1x128xi1> to vector<1x128xi1>
    %113 = vector.broadcast %112 : vector<1x128xi1> to vector<3x128xi1>
    %114 = vector.broadcast %cst_80 : f32 to vector<3x128xf32>
    %115 = arith.select %113, %111, %114 : vector<3x128xi1>, vector<3x128xf32>
    %116 = arith.addf %102, %115 : vector<3x128xf32>
    %c0_81 = arith.constant 0 : index
    %c0_82 = arith.constant 0 : index
    %c0_83 = arith.constant 0 : index
    %117 = vector.load %arg9[%c0_81, %c0_82, %c0_83] : memref<1x3x128xf32, #tpu.memory_space<vmem>>, vector<1x3x128xf32>
    %118 = vector.shape_cast %117 : vector<1x3x128xf32> to vector<3x128xf32>
    %119 = vector.shape_cast %116 : vector<3x128xf32> to vector<1x3x128xf32>
    tpu.vector_store %arg9[%c0_81, %c0_82, %c0_83], %119 {strides = array<i32>} : memref<1x3x128xf32, #tpu.memory_space<vmem>>, vector<1x3x128xf32>,
    %cst_84 = arith.constant 0.000000e+00 : f32
    %120 = vector.broadcast %cst_84 : f32 to vector<4x128xf32>
    %c0_85 = arith.constant 0 : index
    %c0_86 = arith.constant 0 : index
    %121 = vector.load %arg1[%c0_85, %c0_86] : memref<2x256xf32, #tpu.memory_space<vmem>>, vector<1x128xf32>
    %cst_87 = arith.constant 1.000000e+00 : f32
    %122 = vector.broadcast %cst_87 : f32 to vector<1x128xf32>
    %123 = arith.cmpf one, %121, %122 : vector<1x128xf32>
    %c0_88 = arith.constant 0 : index
    %c0_89 = arith.constant 0 : index
    %c0_90 = arith.constant 0 : index
    %124 = vector.load %arg6[%c0_88, %c0_89, %c0_90] : memref<2x4x256xf32, #tpu.memory_space<vmem>>, vector<1x4x128xf32>
    %125 = vector.shape_cast %124 : vector<1x4x128xf32> to vector<4x128xf32>
    %c0_91 = arith.constant 0 : index
    %c0_92 = arith.constant 0 : index
    %c0_93 = arith.constant 0 : index
    %126 = vector.load %arg2[%c0_91, %c0_92, %c0_93] : memref<2x4x256xf32, #tpu.memory_space<vmem>>, vector<1x4x128xf32>
    %127 = vector.shape_cast %126 : vector<1x4x128xf32> to vector<4x128xf32>
    %128 = arith.subf %125, %127 : vector<4x128xf32>
    %129 = arith.mulf %128, %128 : vector<4x128xf32>
    %cst_94 = arith.constant 0.000000e+00 : f32
    %130 = vector.shape_cast %123 : vector<1x128xi1> to vector<1x128xi1>
    %131 = vector.broadcast %130 : vector<1x128xi1> to vector<4x128xi1>
    %132 = vector.broadcast %cst_94 : f32 to vector<4x128xf32>
    %133 = arith.select %131, %129, %132 : vector<4x128xi1>, vector<4x128xf32>
    %134 = arith.addf %120, %133 : vector<4x128xf32>
    %c0_95 = arith.constant 0 : index
    %c128_96 = arith.constant 128 : index
    %135 = vector.load %arg1[%c0_95, %c128_96] : memref<2x256xf32, #tpu.memory_space<vmem>>, vector<1x128xf32>
    %cst_97 = arith.constant 1.000000e+00 : f32
    %136 = vector.broadcast %cst_97 : f32 to vector<1x128xf32>
    %137 = arith.cmpf one, %135, %136 : vector<1x128xf32>
    %c0_98 = arith.constant 0 : index
    %c0_99 = arith.constant 0 : index
    %c128_100 = arith.constant 128 : index
    %138 = vector.load %arg6[%c0_98, %c0_99, %c128_100] : memref<2x4x256xf32, #tpu.memory_space<vmem>>, vector<1x4x128xf32>
    %139 = vector.shape_cast %138 : vector<1x4x128xf32> to vector<4x128xf32>
    %c0_101 = arith.constant 0 : index
    %c0_102 = arith.constant 0 : index
    %c128_103 = arith.constant 128 : index
    %140 = vector.load %arg2[%c0_101, %c0_102, %c128_103] : memref<2x4x256xf32, #tpu.memory_space<vmem>>, vector<1x4x128xf32>
    %141 = vector.shape_cast %140 : vector<1x4x128xf32> to vector<4x128xf32>
    %142 = arith.subf %139, %141 : vector<4x128xf32>
    %143 = arith.mulf %142, %142 : vector<4x128xf32>
    %cst_104 = arith.constant 0.000000e+00 : f32
    %144 = vector.shape_cast %137 : vector<1x128xi1> to vector<1x128xi1>
    %145 = vector.broadcast %144 : vector<1x128xi1> to vector<4x128xi1>
    %146 = vector.broadcast %cst_104 : f32 to vector<4x128xf32>
    %147 = arith.select %145, %143, %146 : vector<4x128xi1>, vector<4x128xf32>
    %148 = arith.addf %134, %147 : vector<4x128xf32>
    %c1_105 = arith.constant 1 : index
    %c0_106 = arith.constant 0 : index
    %149 = vector.load %arg1[%c1_105, %c0_106] : memref<2x256xf32, #tpu.memory_space<vmem>>, vector<1x128xf32>
    %cst_107 = arith.constant 1.000000e+00 : f32
    %150 = vector.broadcast %cst_107 : f32 to vector<1x128xf32>
    %151 = arith.cmpf one, %149, %150 : vector<1x128xf32>
    %c1_108 = arith.constant 1 : index
    %c0_109 = arith.constant 0 : index
    %c0_110 = arith.constant 0 : index
    %152 = vector.load %arg6[%c1_108, %c0_109, %c0_110] : memref<2x4x256xf32, #tpu.memory_space<vmem>>, vector<1x4x128xf32>
    %153 = vector.shape_cast %152 : vector<1x4x128xf32> to vector<4x128xf32>
    %c1_111 = arith.constant 1 : index
    %c0_112 = arith.constant 0 : index
    %c0_113 = arith.constant 0 : index
    %154 = vector.load %arg2[%c1_111, %c0_112, %c0_113] : memref<2x4x256xf32, #tpu.memory_space<vmem>>, vector<1x4x128xf32>
    %155 = vector.shape_cast %154 : vector<1x4x128xf32> to vector<4x128xf32>
    %156 = arith.subf %153, %155 : vector<4x128xf32>
    %157 = arith.mulf %156, %156 : vector<4x128xf32>
    %cst_114 = arith.constant 0.000000e+00 : f32
    %158 = vector.shape_cast %151 : vector<1x128xi1> to vector<1x128xi1>
    %159 = vector.broadcast %158 : vector<1x128xi1> to vector<4x128xi1>
    %160 = vector.broadcast %cst_114 : f32 to vector<4x128xf32>
    %161 = arith.select %159, %157, %160 : vector<4x128xi1>, vector<4x128xf32>
    %162 = arith.addf %148, %161 : vector<4x128xf32>
    %c1_115 = arith.constant 1 : index
    %c128_116 = arith.constant 128 : index
    %163 = vector.load %arg1[%c1_115, %c128_116] : memref<2x256xf32, #tpu.memory_space<vmem>>, vector<1x128xf32>
    %cst_117 = arith.constant 1.000000e+00 : f32
    %164 = vector.broadcast %cst_117 : f32 to vector<1x128xf32>
    %165 = arith.cmpf one, %163, %164 : vector<1x128xf32>
    %c1_118 = arith.constant 1 : index
    %c0_119 = arith.constant 0 : index
    %c128_120 = arith.constant 128 : index
    %166 = vector.load %arg6[%c1_118, %c0_119, %c128_120] : memref<2x4x256xf32, #tpu.memory_space<vmem>>, vector<1x4x128xf32>
    %167 = vector.shape_cast %166 : vector<1x4x128xf32> to vector<4x128xf32>
    %c1_121 = arith.constant 1 : index
    %c0_122 = arith.constant 0 : index
    %c128_123 = arith.constant 128 : index
    %168 = vector.load %arg2[%c1_121, %c0_122, %c128_123] : memref<2x4x256xf32, #tpu.memory_space<vmem>>, vector<1x4x128xf32>
    %169 = vector.shape_cast %168 : vector<1x4x128xf32> to vector<4x128xf32>
    %170 = arith.subf %167, %169 : vector<4x128xf32>
    %171 = arith.mulf %170, %170 : vector<4x128xf32>
    %cst_124 = arith.constant 0.000000e+00 : f32
    %172 = vector.shape_cast %165 : vector<1x128xi1> to vector<1x128xi1>
    %173 = vector.broadcast %172 : vector<1x128xi1> to vector<4x128xi1>
    %174 = vector.broadcast %cst_124 : f32 to vector<4x128xf32>
    %175 = arith.select %173, %171, %174 : vector<4x128xi1>, vector<4x128xf32>
    %176 = arith.addf %162, %175 : vector<4x128xf32>
    %c0_125 = arith.constant 0 : index
    %c0_126 = arith.constant 0 : index
    %c0_127 = arith.constant 0 : index
    %177 = vector.load %arg10[%c0_125, %c0_126, %c0_127] : memref<1x4x128xf32, #tpu.memory_space<vmem>>, vector<1x4x128xf32>
    %178 = vector.shape_cast %177 : vector<1x4x128xf32> to vector<4x128xf32>
    %179 = vector.shape_cast %176 : vector<4x128xf32> to vector<1x4x128xf32>
    tpu.vector_store %arg10[%c0_125, %c0_126, %c0_127], %179 {strides = array<i32>} : memref<1x4x128xf32, #tpu.memory_space<vmem>>, vector<1x4x128xf32>,
    %cst_128 = arith.constant 0.000000e+00 : f32
    %180 = vector.broadcast %cst_128 : f32 to vector<3x128xf32>
    %c0_129 = arith.constant 0 : index
    %c0_130 = arith.constant 0 : index
    %181 = vector.load %arg1[%c0_129, %c0_130] : memref<2x256xf32, #tpu.memory_space<vmem>>, vector<1x128xf32>
    %cst_131 = arith.constant 1.000000e+00 : f32
    %182 = vector.broadcast %cst_131 : f32 to vector<1x128xf32>
    %183 = arith.cmpf one, %181, %182 : vector<1x128xf32>
    %c0_132 = arith.constant 0 : index
    %c0_133 = arith.constant 0 : index
    %c0_134 = arith.constant 0 : index
    %184 = vector.load %arg7[%c0_132, %c0_133, %c0_134] : memref<2x3x256xf32, #tpu.memory_space<vmem>>, vector<1x3x128xf32>
    %185 = vector.shape_cast %184 : vector<1x3x128xf32> to vector<3x128xf32>
    %c0_135 = arith.constant 0 : index
    %c0_136 = arith.constant 0 : index
    %c0_137 = arith.constant 0 : index
    %186 = vector.load %arg3[%c0_135, %c0_136, %c0_137] : memref<2x3x256xf32, #tpu.memory_space<vmem>>, vector<1x3x128xf32>
    %187 = vector.shape_cast %186 : vector<1x3x128xf32> to vector<3x128xf32>
    %188 = arith.subf %185, %187 : vector<3x128xf32>
    %189 = arith.mulf %188, %188 : vector<3x128xf32>
    %cst_138 = arith.constant 0.000000e+00 : f32
    %190 = vector.shape_cast %183 : vector<1x128xi1> to vector<1x128xi1>
    %191 = vector.broadcast %190 : vector<1x128xi1> to vector<3x128xi1>
    %192 = vector.broadcast %cst_138 : f32 to vector<3x128xf32>
    %193 = arith.select %191, %189, %192 : vector<3x128xi1>, vector<3x128xf32>
    %194 = arith.addf %180, %193 : vector<3x128xf32>
    %c0_139 = arith.constant 0 : index
    %c128_140 = arith.constant 128 : index
    %195 = vector.load %arg1[%c0_139, %c128_140] : memref<2x256xf32, #tpu.memory_space<vmem>>, vector<1x128xf32>
    %cst_141 = arith.constant 1.000000e+00 : f32
    %196 = vector.broadcast %cst_141 : f32 to vector<1x128xf32>
    %197 = arith.cmpf one, %195, %196 : vector<1x128xf32>
    %c0_142 = arith.constant 0 : index
    %c0_143 = arith.constant 0 : index
    %c128_144 = arith.constant 128 : index
    %198 = vector.load %arg7[%c0_142, %c0_143, %c128_144] : memref<2x3x256xf32, #tpu.memory_space<vmem>>, vector<1x3x128xf32>
    %199 = vector.shape_cast %198 : vector<1x3x128xf32> to vector<3x128xf32>
    %c0_145 = arith.constant 0 : index
    %c0_146 = arith.constant 0 : index
    %c128_147 = arith.constant 128 : index
    %200 = vector.load %arg3[%c0_145, %c0_146, %c128_147] : memref<2x3x256xf32, #tpu.memory_space<vmem>>, vector<1x3x128xf32>
    %201 = vector.shape_cast %200 : vector<1x3x128xf32> to vector<3x128xf32>
    %202 = arith.subf %199, %201 : vector<3x128xf32>
    %203 = arith.mulf %202, %202 : vector<3x128xf32>
    %cst_148 = arith.constant 0.000000e+00 : f32
    %204 = vector.shape_cast %197 : vector<1x128xi1> to vector<1x128xi1>
    %205 = vector.broadcast %204 : vector<1x128xi1> to vector<3x128xi1>
    %206 = vector.broadcast %cst_148 : f32 to vector<3x128xf32>
    %207 = arith.select %205, %203, %206 : vector<3x128xi1>, vector<3x128xf32>
    %208 = arith.addf %194, %207 : vector<3x128xf32>
    %c1_149 = arith.constant 1 : index
    %c0_150 = arith.constant 0 : index
    %209 = vector.load %arg1[%c1_149, %c0_150] : memref<2x256xf32, #tpu.memory_space<vmem>>, vector<1x128xf32>
    %cst_151 = arith.constant 1.000000e+00 : f32
    %210 = vector.broadcast %cst_151 : f32 to vector<1x128xf32>
    %211 = arith.cmpf one, %209, %210 : vector<1x128xf32>
    %c1_152 = arith.constant 1 : index
    %c0_153 = arith.constant 0 : index
    %c0_154 = arith.constant 0 : index
    %212 = vector.load %arg7[%c1_152, %c0_153, %c0_154] : memref<2x3x256xf32, #tpu.memory_space<vmem>>, vector<1x3x128xf32>
    %213 = vector.shape_cast %212 : vector<1x3x128xf32> to vector<3x128xf32>
    %c1_155 = arith.constant 1 : index
    %c0_156 = arith.constant 0 : index
    %c0_157 = arith.constant 0 : index
    %214 = vector.load %arg3[%c1_155, %c0_156, %c0_157] : memref<2x3x256xf32, #tpu.memory_space<vmem>>, vector<1x3x128xf32>
    %215 = vector.shape_cast %214 : vector<1x3x128xf32> to vector<3x128xf32>
    %216 = arith.subf %213, %215 : vector<3x128xf32>
    %217 = arith.mulf %216, %216 : vector<3x128xf32>
    %cst_158 = arith.constant 0.000000e+00 : f32
    %218 = vector.shape_cast %211 : vector<1x128xi1> to vector<1x128xi1>
    %219 = vector.broadcast %218 : vector<1x128xi1> to vector<3x128xi1>
    %220 = vector.broadcast %cst_158 : f32 to vector<3x128xf32>
    %221 = arith.select %219, %217, %220 : vector<3x128xi1>, vector<3x128xf32>
    %222 = arith.addf %208, %221 : vector<3x128xf32>
    %c1_159 = arith.constant 1 : index
    %c128_160 = arith.constant 128 : index
    %223 = vector.load %arg1[%c1_159, %c128_160] : memref<2x256xf32, #tpu.memory_space<vmem>>, vector<1x128xf32>
    %cst_161 = arith.constant 1.000000e+00 : f32
    %224 = vector.broadcast %cst_161 : f32 to vector<1x128xf32>
    %225 = arith.cmpf one, %223, %224 : vector<1x128xf32>
    %c1_162 = arith.constant 1 : index
    %c0_163 = arith.constant 0 : index
    %c128_164 = arith.constant 128 : index
    %226 = vector.load %arg7[%c1_162, %c0_163, %c128_164] : memref<2x3x256xf32, #tpu.memory_space<vmem>>, vector<1x3x128xf32>
    %227 = vector.shape_cast %226 : vector<1x3x128xf32> to vector<3x128xf32>
    %c1_165 = arith.constant 1 : index
    %c0_166 = arith.constant 0 : index
    %c128_167 = arith.constant 128 : index
    %228 = vector.load %arg3[%c1_165, %c0_166, %c128_167] : memref<2x3x256xf32, #tpu.memory_space<vmem>>, vector<1x3x128xf32>
    %229 = vector.shape_cast %228 : vector<1x3x128xf32> to vector<3x128xf32>
    %230 = arith.subf %227, %229 : vector<3x128xf32>
    %231 = arith.mulf %230, %230 : vector<3x128xf32>
    %cst_168 = arith.constant 0.000000e+00 : f32
    %232 = vector.shape_cast %225 : vector<1x128xi1> to vector<1x128xi1>
    %233 = vector.broadcast %232 : vector<1x128xi1> to vector<3x128xi1>
    %234 = vector.broadcast %cst_168 : f32 to vector<3x128xf32>
    %235 = arith.select %233, %231, %234 : vector<3x128xi1>, vector<3x128xf32>
    %236 = arith.addf %222, %235 : vector<3x128xf32>
    %c0_169 = arith.constant 0 : index
    %c0_170 = arith.constant 0 : index
    %c0_171 = arith.constant 0 : index
    %237 = vector.load %arg11[%c0_169, %c0_170, %c0_171] : memref<1x3x128xf32, #tpu.memory_space<vmem>>, vector<1x3x128xf32>
    %238 = vector.shape_cast %237 : vector<1x3x128xf32> to vector<3x128xf32>
    %239 = vector.shape_cast %236 : vector<3x128xf32> to vector<1x3x128xf32>
    tpu.vector_store %arg11[%c0_169, %c0_170, %c0_171], %239 {strides = array<i32>} : memref<1x3x128xf32, #tpu.memory_space<vmem>>, vector<1x3x128xf32>,
    return
  }
  func.func @transform_0(%arg0: i32) -> (i32, i32) {
    %c0_i32 = arith.constant 0 : i32
    %c0_i32_0 = arith.constant 0 : i32
    return %c0_i32, %arg0 : i32, i32
  }
  func.func @transform_1(%arg0: i32) -> (i32, i32, i32) {
    %c0_i32 = arith.constant 0 : i32
    %c0_i32_0 = arith.constant 0 : i32
    %c0_i32_1 = arith.constant 0 : i32
    return %c0_i32, %c0_i32_0, %arg0 : i32, i32, i32
  }
  func.func @transform_2(%arg0: i32) -> (i32, i32, i32) {
    %c0_i32 = arith.constant 0 : i32
    %c0_i32_0 = arith.constant 0 : i32
    %c0_i32_1 = arith.constant 0 : i32
    return %c0_i32, %c0_i32_0, %arg0 : i32, i32, i32
  }
  func.func @transform_3(%arg0: i32) -> (i32, i32, i32) {
    %c0_i32 = arith.constant 0 : i32
    %c0_i32_0 = arith.constant 0 : i32
    %c0_i32_1 = arith.constant 0 : i32
    return %c0_i32, %c0_i32_0, %arg0 : i32, i32, i32
  }
  func.func @transform_4(%arg0: i32) -> (i32, i32, i32) {
    %c0_i32 = arith.constant 0 : i32
    %c0_i32_0 = arith.constant 0 : i32
    %c0_i32_1 = arith.constant 0 : i32
    return %c0_i32, %c0_i32_0, %arg0 : i32, i32, i32
  }
  func.func @transform_5(%arg0: i32) -> (i32, i32, i32) {
    %c0_i32 = arith.constant 0 : i32
    %c0_i32_0 = arith.constant 0 : i32
    %c0_i32_1 = arith.constant 0 : i32
    return %c0_i32, %c0_i32_0, %arg0 : i32, i32, i32
  }
  func.func @transform_6(%arg0: i32) -> (i32, i32, i32) {
    %c0_i32 = arith.constant 0 : i32
    %c0_i32_0 = arith.constant 0 : i32
    %c0_i32_1 = arith.constant 0 : i32
    return %c0_i32, %c0_i32_0, %arg0 : i32, i32, i32
  }
  func.func @transform_7(%arg0: i32) -> (i32, i32, i32) {
    %c0_i32 = arith.constant 0 : i32
    %c0_i32_0 = arith.constant 0 : i32
    %c0_i32_1 = arith.constant 0 : i32
    return %arg0, %c0_i32, %c0_i32_0 : i32, i32, i32
  }
  func.func @transform_8(%arg0: i32) -> (i32, i32, i32) {
    %c0_i32 = arith.constant 0 : i32
    %c0_i32_0 = arith.constant 0 : i32
    %c0_i32_1 = arith.constant 0 : i32
    return %arg0, %c0_i32, %c0_i32_0 : i32, i32, i32
  }
  func.func @transform_9(%arg0: i32) -> (i32, i32, i32) {
    %c0_i32 = arith.constant 0 : i32
    %c0_i32_0 = arith.constant 0 : i32
    %c0_i32_1 = arith.constant 0 : i32
    return %arg0, %c0_i32, %c0_i32_0 : i32, i32, i32
  }
  func.func @transform_10(%arg0: i32) -> (i32, i32, i32) {
    %c0_i32 = arith.constant 0 : i32
    %c0_i32_0 = arith.constant 0 : i32
    %c0_i32_1 = arith.constant 0 : i32
    return %arg0, %c0_i32, %c0_i32_0 : i32, i32, i32
  }
}

</mosaic_0001>

<llo_original>
// kernel: compute_loss.1
$region0: #{compute_loss.1}
  #allocation0 [shape = 'u32[]', space=smem, size = 0x4, offset = 0x4, fixed_abs, tag = 'smem constant byte address 0x4 - core index']
  #allocation1 [shape = 'u32[72,128]{1,0:T(1,128)}', space=vmem, size = 0x9000, scoped, tag = 'internal scratch']
  %s0 = inlined_call_operand.vmem [shape: f32[2,256], index: 0, kind: input, shape index: {}]
  %s1 = inlined_call_operand.vmem [shape: f32[2,4,256], index: 1, kind: input, shape index: {}]
  %s2 = inlined_call_operand.vmem [shape: f32[2,3,256], index: 2, kind: input, shape index: {}]
  %s3 = inlined_call_operand.vmem [shape: f32[2,4,256], index: 3, kind: input, shape index: {}]
  %s4 = inlined_call_operand.vmem [shape: f32[2,3,256], index: 4, kind: input, shape index: {}]
  %s5 = inlined_call_operand.vmem [shape: f32[2,4,256], index: 5, kind: input, shape index: {}]
  %s6 = inlined_call_operand.vmem [shape: f32[2,3,256], index: 6, kind: input, shape index: {}]
  %s7 = inlined_call_operand.vmem [shape: f32[1,4,128], index: 7, kind: output, shape index: {0}]
  %s8 = inlined_call_operand.vmem [shape: f32[1,3,128], index: 8, kind: output, shape index: {1}]
  %s9 = inlined_call_operand.vmem [shape: f32[1,4,128], index: 9, kind: output, shape index: {2}]
  %s10 = inlined_call_operand.vmem [shape: f32[1,3,128], index: 10, kind: output, shape index: {3}]
  %11 = xla_tuple %s7, %s8, %s9, %s10
  %s12 = sld [smem:[#allocation0]]
  $region62: #{compute_loss.1} parent=0
    _
  %s14 = ssub.s32 1, %s12
  %s15 = scalar_select 0, %s14, %s12
  // Predicated region
  $region2: #{compute_loss.1} parent=0 // pred_check
    _
  $region3: #{compute_loss.1} parent=0 // pred_check_branch
    %17 = sbr.rel (0) target = $region5
  $region4: #{compute_loss.1} parent=0 // pred_region
    _
  $region5: #{compute_loss.1} parent=0 // pred_fallthru
    _
  // Predicated region
  $region6: #{compute_loss.1} parent=0 // pred_check
    _
  $region7: #{compute_loss.1} parent=0 // pred_check_branch
    %19 = sbr.rel (0) target = $region9
  $region8: #{compute_loss.1} parent=0 // pred_region
    _
  $region9: #{compute_loss.1} parent=0 // pred_fallthru
    _
  // Predicated region
  $region10: #{compute_loss.1} parent=0 // pred_check
    _
  $region11: #{compute_loss.1} parent=0 // pred_check_branch
    %21 = sbr.rel (0) target = $region13
  $region12: #{compute_loss.1} parent=0 // pred_region
    _
  $region13: #{compute_loss.1} parent=0 // pred_fallthru
    _
  // Predicated region
  $region14: #{compute_loss.1} parent=0 // pred_check
    _
  $region15: #{compute_loss.1} parent=0 // pred_check_branch
    %23 = sbr.rel (0) target = $region17
  $region16: #{compute_loss.1} parent=0 // pred_region
    _
  $region17: #{compute_loss.1} parent=0 // pred_fallthru
    _
  // Predicated region
  $region18: #{compute_loss.1} parent=0 // pred_check
    _
  $region19: #{compute_loss.1} parent=0 // pred_check_branch
    %25 = sbr.rel (0) target = $region21
  $region20: #{compute_loss.1} parent=0 // pred_region
    _
  $region21: #{compute_loss.1} parent=0 // pred_fallthru
    _
  // Predicated region
  $region22: #{compute_loss.1} parent=0 // pred_check
    _
  $region23: #{compute_loss.1} parent=0 // pred_check_branch
    %27 = sbr.rel (0) target = $region25
  $region24: #{compute_loss.1} parent=0 // pred_region
    _
  $region25: #{compute_loss.1} parent=0 // pred_fallthru
    _
  // Predicated region
  $region26: #{compute_loss.1} parent=0 // pred_check
    _
  $region27: #{compute_loss.1} parent=0 // pred_check_branch
    %29 = sbr.rel (0) target = $region29
  $region28: #{compute_loss.1} parent=0 // pred_region
    _
  $region29: #{compute_loss.1} parent=0 // pred_fallthru
    _
  %v30 = vld [vmem:[%s0] sm:$0x1]
  %vm31 = vcmp.ne.f32.partialorder %v30, 1.0
  %v32 = vld [vmem:[%s3] sm:$0xf]
  %v33 = vld [vmem:[%s1] sm:$0xf]
  %v34 = vsub.f32 %v32, %v33
  %v35 = vmul.f32 %v34, %v34
  %v36 = vsel %vm31, 1, 0
  %v37 = vperm.slane %v36, 0
  %vm38 = vcmp.eq.s32.totalorder %v37, 1
  %v39 = vsel %vm38, %v35, 0.0
  %v40 = vadd.f32 %v39, 0.0
  %v41 = vld [vmem:[%s0 + $0x2] sm:$0x1]
  %vm42 = vcmp.ne.f32.partialorder %v41, 1.0
  %v43 = vld [vmem:[%s3 + $0x4] sm:$0xf]
  %v44 = vld [vmem:[%s1 + $0x4] sm:$0xf]
  %v45 = vsub.f32 %v43, %v44
  %v46 = vmul.f32 %v45, %v45
  %v47 = vsel %vm42, 1, 0
  %v48 = vperm.slane %v47, 0
  %vm49 = vcmp.eq.s32.totalorder %v48, 1
  %v50 = vsel %vm49, %v46, 0.0
  %v51 = vadd.f32 %v40, %v50
  %v52 = vld [vmem:[%s0 + $0x1] sm:$0x1]
  %vm53 = vcmp.ne.f32.partialorder %v52, 1.0
  %s54 = scalar_lea.vmem %s3, 8
  %v55 = vld [vmem:[%s54] sm:$0xf]
  %s56 = scalar_lea.vmem %s1, 8
  %v57 = vld [vmem:[%s56] sm:$0xf]
  %v58 = vsub.f32 %v55, %v57
  %v59 = vmul.f32 %v58, %v58
  %v60 = vsel %vm53, 1, 0
  %v61 = vperm.slane %v60, 0
  %vm62 = vcmp.eq.s32.totalorder %v61, 1
  %v63 = vsel %vm62, %v59, 0.0
  %v64 = vadd.f32 %v51, %v63
  %v65 = vld [vmem:[%s0 + $0x3] sm:$0x1]
  %vm66 = vcmp.ne.f32.partialorder %v65, 1.0
  %v67 = vld [vmem:[%s54 + $0x4] sm:$0xf]
  %v68 = vld [vmem:[%s56 + $0x4] sm:$0xf]
  %v69 = vsub.f32 %v67, %v68
  %v70 = vmul.f32 %v69, %v69
  %v71 = vsel %vm66, 1, 0
  %v72 = vperm.slane %v71, 0
  %vm73 = vcmp.eq.s32.totalorder %v72, 1
  %v74 = vsel %vm73, %v70, 0.0
  %v75 = vadd.f32 %v64, %v74
  %76 = vst [vmem:[%s7] sm:$0xf] %v75
  %v77 = vld [vmem:[%s0] sm:$0x1]
  %vm78 = vcmp.ne.f32.partialorder %v77, 1.0
  %v79 = vld [vmem:[%s4] sm:$0x7]
  %v80 = vld [vmem:[%s2] sm:$0x7]
  %v81 = vsub.f32 %v79, %v80
  %v82 = vmul.f32 %v81, %v81
  %v83 = vsel %vm78, 1, 0
  %v84 = vperm.slane %v83, 0
  %vm85 = vcmp.eq.s32.totalorder %v84, 1
  %v86 = vsel %vm85, %v82, 0.0
  %v87 = vadd.f32 %v86, 0.0
  %v88 = vld [vmem:[%s0 + $0x2] sm:$0x1]
  %vm89 = vcmp.ne.f32.partialorder %v88, 1.0
  %v90 = vld [vmem:[%s4 + $0x4] sm:$0x7]
  %v91 = vld [vmem:[%s2 + $0x4] sm:$0x7]
  %v92 = vsub.f32 %v90, %v91
  %v93 = vmul.f32 %v92, %v92
  %v94 = vsel %vm89, 1, 0
  %v95 = vperm.slane %v94, 0
  %vm96 = vcmp.eq.s32.totalorder %v95, 1
  %v97 = vsel %vm96, %v93, 0.0
  %v98 = vadd.f32 %v87, %v97
  %v99 = vld [vmem:[%s0 + $0x1] sm:$0x1]
  %vm100 = vcmp.ne.f32.partialorder %v99, 1.0
  %s101 = scalar_lea.vmem %s4, 8
  %v102 = vld [vmem:[%s101] sm:$0x7]
  %s103 = scalar_lea.vmem %s2, 8
  %v104 = vld [vmem:[%s103] sm:$0x7]
  %v105 = vsub.f32 %v102, %v104
  %v106 = vmul.f32 %v105, %v105
  %v107 = vsel %vm100, 1, 0
  %v108 = vperm.slane %v107, 0
  %vm109 = vcmp.eq.s32.totalorder %v108, 1
  %v110 = vsel %vm109, %v106, 0.0
  %v111 = vadd.f32 %v98, %v110
  %v112 = vld [vmem:[%s0 + $0x3] sm:$0x1]
  %vm113 = vcmp.ne.f32.partialorder %v112, 1.0
  %v114 = vld [vmem:[%s101 + $0x4] sm:$0x7]
  %v115 = vld [vmem:[%s103 + $0x4] sm:$0x7]
  %v116 = vsub.f32 %v114, %v115
  %v117 = vmul.f32 %v116, %v116
  %v118 = vsel %vm113, 1, 0
  %v119 = vperm.slane %v118, 0
  %vm120 = vcmp.eq.s32.totalorder %v119, 1
  %v121 = vsel %vm120, %v117, 0.0
  %v122 = vadd.f32 %v111, %v121
  %123 = vst [vmem:[%s8] sm:$0x7] %v122
  %v124 = vld [vmem:[%s0] sm:$0x1]
  %vm125 = vcmp.ne.f32.partialorder %v124, 1.0
  %v126 = vld [vmem:[%s5] sm:$0xf]
  %v127 = vld [vmem:[%s1] sm:$0xf]
  %v128 = vsub.f32 %v126, %v127
  %v129 = vmul.f32 %v128, %v128
  %v130 = vsel %vm125, 1, 0
  %v131 = vperm.slane %v130, 0
  %vm132 = vcmp.eq.s32.totalorder %v131, 1
  %v133 = vsel %vm132, %v129, 0.0
  %v134 = vadd.f32 %v133, 0.0
  %v135 = vld [vmem:[%s0 + $0x2] sm:$0x1]
  %vm136 = vcmp.ne.f32.partialorder %v135, 1.0
  %v137 = vld [vmem:[%s5 + $0x4] sm:$0xf]
  %v138 = vld [vmem:[%s1 + $0x4] sm:$0xf]
  %v139 = vsub.f32 %v137, %v138
  %v140 = vmul.f32 %v139, %v139
  %v141 = vsel %vm136, 1, 0
  %v142 = vperm.slane %v141, 0
  %vm143 = vcmp.eq.s32.totalorder %v142, 1
  %v144 = vsel %vm143, %v140, 0.0
  %v145 = vadd.f32 %v134, %v144
  %v146 = vld [vmem:[%s0 + $0x1] sm:$0x1]
  %vm147 = vcmp.ne.f32.partialorder %v146, 1.0
  %s148 = scalar_lea.vmem %s5, 8
  %v149 = vld [vmem:[%s148] sm:$0xf]
  %v150 = vld [vmem:[%s56] sm:$0xf]
  %v151 = vsub.f32 %v149, %v150
  %v152 = vmul.f32 %v151, %v151
  %v153 = vsel %vm147, 1, 0
  %v154 = vperm.slane %v153, 0
  %vm155 = vcmp.eq.s32.totalorder %v154, 1
  %v156 = vsel %vm155, %v152, 0.0
  %v157 = vadd.f32 %v145, %v156
  %v158 = vld [vmem:[%s0 + $0x3] sm:$0x1]
  %vm159 = vcmp.ne.f32.partialorder %v158, 1.0
  %v160 = vld [vmem:[%s148 + $0x4] sm:$0xf]
  %v161 = vld [vmem:[%s56 + $0x4] sm:$0xf]
  %v162 = vsub.f32 %v160, %v161
  %v163 = vmul.f32 %v162, %v162
  %v164 = vsel %vm159, 1, 0
  %v165 = vperm.slane %v164, 0
  %vm166 = vcmp.eq.s32.totalorder %v165, 1
  %v167 = vsel %vm166, %v163, 0.0
  %v168 = vadd.f32 %v157, %v167
  %169 = vst [vmem:[%s9] sm:$0xf] %v168
  %v170 = vld [vmem:[%s0] sm:$0x1]
  %vm171 = vcmp.ne.f32.partialorder %v170, 1.0
  %v172 = vld [vmem:[%s6] sm:$0x7]
  %v173 = vld [vmem:[%s2] sm:$0x7]
  %v174 = vsub.f32 %v172, %v173
  %v175 = vmul.f32 %v174, %v174
  %v176 = vsel %vm171, 1, 0
  %v177 = vperm.slane %v176, 0
  %vm178 = vcmp.eq.s32.totalorder %v177, 1
  %v179 = vsel %vm178, %v175, 0.0
  %v180 = vadd.f32 %v179, 0.0
  %v181 = vld [vmem:[%s0 + $0x2] sm:$0x1]
  %vm182 = vcmp.ne.f32.partialorder %v181, 1.0
  %v183 = vld [vmem:[%s6 + $0x4] sm:$0x7]
  %v184 = vld [vmem:[%s2 + $0x4] sm:$0x7]
  %v185 = vsub.f32 %v183, %v184
  %v186 = vmul.f32 %v185, %v185
  %v187 = vsel %vm182, 1, 0
  %v188 = vperm.slane %v187, 0
  %vm189 = vcmp.eq.s32.totalorder %v188, 1
  %v190 = vsel %vm189, %v186, 0.0
  %v191 = vadd.f32 %v180, %v190
  %v192 = vld [vmem:[%s0 + $0x1] sm:$0x1]
  %vm193 = vcmp.ne.f32.partialorder %v192, 1.0
  %s194 = scalar_lea.vmem %s6, 8
  %v195 = vld [vmem:[%s194] sm:$0x7]
  %v196 = vld [vmem:[%s103] sm:$0x7]
  %v197 = vsub.f32 %v195, %v196
  %v198 = vmul.f32 %v197, %v197
  %v199 = vsel %vm193, 1, 0
  %v200 = vperm.slane %v199, 0
  %vm201 = vcmp.eq.s32.totalorder %v200, 1
  %v202 = vsel %vm201, %v198, 0.0
  %v203 = vadd.f32 %v191, %v202
  %v204 = vld [vmem:[%s0 + $0x3] sm:$0x1]
  %vm205 = vcmp.ne.f32.partialorder %v204, 1.0
  %v206 = vld [vmem:[%s194 + $0x4] sm:$0x7]
  %v207 = vld [vmem:[%s103 + $0x4] sm:$0x7]
  %v208 = vsub.f32 %v206, %v207
  %v209 = vmul.f32 %v208, %v208
  %v210 = vsel %vm205, 1, 0
  %v211 = vperm.slane %v210, 0
  %vm212 = vcmp.eq.s32.totalorder %v211, 1
  %v213 = vsel %vm212, %v209, 0.0
  %v214 = vadd.f32 %v203, %v213
  %215 = vst [vmem:[%s10] sm:$0x7] %v214
  // Predicated region
  $region30: #{compute_loss.1} parent=0 // pred_check
    _
  $region31: #{compute_loss.1} parent=0 // pred_check_branch
    %217 = sbr.rel (0) target = $region33
  $region32: #{compute_loss.1} parent=0 // pred_region
    _
  $region33: #{compute_loss.1} parent=0 // pred_fallthru
    _
  // Predicated region
  $region34: #{compute_loss.1} parent=0 // pred_check
    _
  $region35: #{compute_loss.1} parent=0 // pred_check_branch
    %219 = sbr.rel (0) target = $region37
  $region36: #{compute_loss.1} parent=0 // pred_region
    _
  $region37: #{compute_loss.1} parent=0 // pred_fallthru
    _
  // Predicated region
  $region38: #{compute_loss.1} parent=0 // pred_check
    _
  $region39: #{compute_loss.1} parent=0 // pred_check_branch
    %221 = sbr.rel (0) target = $region41
  $region40: #{compute_loss.1} parent=0 // pred_region
    _
  $region41: #{compute_loss.1} parent=0 // pred_fallthru
    _
  // Predicated region
  $region42: #{compute_loss.1} parent=0 // pred_check
    _
  $region43: #{compute_loss.1} parent=0 // pred_check_branch
    %223 = sbr.rel (0) target = $region45
  $region44: #{compute_loss.1} parent=0 // pred_region
    _
  $region45: #{compute_loss.1} parent=0 // pred_fallthru
    _
  // Predicated region
  $region46: #{compute_loss.1} parent=0 // pred_check
    _
  $region47: #{compute_loss.1} parent=0 // pred_check_branch
    %225 = sbr.rel (0) target = $region49
  $region48: #{compute_loss.1} parent=0 // pred_region
    _
  $region49: #{compute_loss.1} parent=0 // pred_fallthru
    _
  // Predicated region
  $region50: #{compute_loss.1} parent=0 // pred_check
    _
  $region51: #{compute_loss.1} parent=0 // pred_check_branch
    %227 = sbr.rel (0) target = $region53
  $region52: #{compute_loss.1} parent=0 // pred_region
    _
  $region53: #{compute_loss.1} parent=0 // pred_fallthru
    _
  // Predicated region
  $region54: #{compute_loss.1} parent=0 // pred_check
    _
  $region55: #{compute_loss.1} parent=0 // pred_check_branch
    %229 = sbr.rel (0) target = $region57
  $region56: #{compute_loss.1} parent=0 // pred_region
    _
  $region57: #{compute_loss.1} parent=0 // pred_fallthru
    _
  // Predicated region
  $region58: #{compute_loss.1} parent=0 // pred_check
    _
  $region59: #{compute_loss.1} parent=0 // pred_check_branch
    %231 = sbr.rel (0) target = $region61
  $region60: #{compute_loss.1} parent=0 // pred_region
    _
  $region61: #{compute_loss.1} parent=0 // pred_fallthru
    _

</llo_original>
